<compile_context>
chip_gen: v7x
topology: tpu7x:2x2x1
jax: 0.10.0
libtpu: 0.0.40
codegen_flags: <defaults>
</compile_context>

<pallas_src>
import math
import typing as tp
from copy import deepcopy
from dataclasses import dataclass, field

import jax
import jax.numpy as jnp
import numpy as np
from jax.experimental import pallas as pl
from jax.experimental.pallas import tpu as pltpu


# ----------------------------- Pallas kernel --------------------------------

_SMALL_BYTES = 1 << 20          # <= 1 MiB: single block, no grid
_TARGET_BLOCK_BYTES = 1 << 20   # ~1 MiB per block for the tiled path
_LANE = 128
_SUBLANE = 32                   # multiple of 8/16/32 -> valid for f32/bf16/int8


def _null_wav_kernel(x_ref, o_ref):
    # Faithful to torch's `wav * 0 + 16385` (propagates NaN/Inf like the ref).
    x = x_ref[...]
    o_ref[...] = x * 0 + jnp.asarray(16385, x.dtype)


def _round_up(v: int, m: int) -> int:
    return ((v + m - 1) // m) * m


def _null_wav_impl(wav: jax.Array) -> jax.Array:
    """`wav * 0 + 16385` on the original (contiguous) shape, no pad/slice."""
    shape = wav.shape
    dtype = wav.dtype
    n = math.prod(shape)
    itemsize = dtype.itemsize
    total_bytes = n * itemsize

    # Lane-dense view: keep the original shape when it is already >= 2-D;
    # only 0-D / 1-D inputs get a (free) reshape to 2-D.
    x = wav if wav.ndim >= 2 else wav.reshape(1, n)

    # ---- small wavs: whole array as a single VMEM block, no grid -----------
    if total_bytes <= _SMALL_BYTES:
        out = pl.pallas_call(
            _null_wav_kernel,
            out_shape=jax.ShapeDtypeStruct(x.shape, dtype),
        )(x)
        return out.reshape(shape)

    S = x.shape[-1]
    lead = n // S
    target_elems = max(_TARGET_BLOCK_BYTES // itemsize, _SUBLANE * _LANE)

    # ---- common case: long last (sample) axis, tiny leading dims -----------
    if S >= 2 * _LANE and lead * _LANE * itemsize <= _TARGET_BLOCK_BYTES:
        tile_s = max(_LANE, ((target_elems // lead) // _LANE) * _LANE)
        # Cap so the grid has >= 2 roughly balanced steps -> both v7x TCs.
        tile_s = max(_LANE, min(tile_s, _round_up(pl.cdiv(S, 2), _LANE)))
        ndim = x.ndim
        block = x.shape[:-1] + (tile_s,)
        index_map = lambda i: (0,) * (ndim - 1) + (i,)
        out = pl.pallas_call(
            _null_wav_kernel,
            out_shape=jax.ShapeDtypeStruct(x.shape, dtype),
            grid=(pl.cdiv(S, tile_s),),
            in_specs=[pl.BlockSpec(block, index_map)],
            out_specs=pl.BlockSpec(block, index_map),
            compiler_params=pltpu.CompilerParams(
                dimension_semantics=("parallel",)),
        )(x)
        return out.reshape(shape)

    # ---- fallback: short last axis / huge leading axis -> tile rows --------
    # TODO(synk): a 2-D grid would be needed if BOTH axes were enormous; not
    # required for audio-shaped (B, C, T) inputs.
    x2 = x.reshape(lead, S)
    tile_r = max(_SUBLANE, ((target_elems // S) // _SUBLANE) * _SUBLANE)
    tile_r = max(_SUBLANE, min(tile_r, _round_up(pl.cdiv(lead, 2), _SUBLANE)))
    out = pl.pallas_call(
        _null_wav_kernel,
        out_shape=jax.ShapeDtypeStruct((lead, S), dtype),
        grid=(pl.cdiv(lead, tile_r),),
        in_specs=[pl.BlockSpec((tile_r, S), lambda i: (i, 0))],
        out_specs=pl.BlockSpec((tile_r, S), lambda i: (i, 0)),
        compiler_params=pltpu.CompilerParams(
            dimension_semantics=("parallel",)),
    )(x2)
    return out.reshape(shape)


# jit-cached per (shape, dtype): one compile + one dispatch per distinct wav
# shape, instead of eager pad/kernel/slice chains per condition.
_null_wav_jit = jax.jit(_null_wav_impl)


def null_wav_pallas(wav: jax.Array) -> jax.Array:
    if math.prod(wav.shape) == 0:
        return wav  # empty wav: nothing to nullify, avoid a useless launch
    return _null_wav_jit(wav)


# ----------------------- ConditioningAttributes glue --------------------------

class AudioCondition(tp.NamedTuple):
    wav: jax.Array
    length: jax.Array
    sample_rate: tp.List[int]
    path: tp.List[tp.Optional[str]] = []
    seek_time: tp.List[tp.Optional[float]] = []


@dataclass
class ConditioningAttributes:
    text: tp.Dict[str, tp.Optional[str]] = field(default_factory=dict)
    audio: tp.Dict[str, AudioCondition] = field(default_factory=dict)

    def __getitem__(self, item):
        return getattr(self, item)

    @property
    def attributes(self):
        return {"text": list(self.text.keys()), "audio": list(self.audio.keys())}


def _copy_samples(samples):
    # Equivalent of deepcopy(samples) for our purposes: conditions are replaced
    # wholesale (never mutated in place), so copying the dicts suffices and we
    # avoid deep-copying device arrays.  This is also why the Pallas call must
    # stay out-of-place (no input_output_aliases).
    return [ConditioningAttributes(text=dict(s.text), audio=dict(s.audio))
            for s in samples]


class ClassifierFreeGuidanceDropoutInference:
    """JAX/Pallas port: 100% condition dropout at inference (p=1)."""

    def __init__(self, seed: int = 1234):
        self.p = 1.0
        self.seed = seed  # torch.Generator is numerically unused here (p=1).

    # -- checks ----------------------------------------------------------------
    def check(self, sample, condition_type, condition):
        if condition_type not in ("text", "audio"):
            raise ValueError(
                f"dropout_condition got an unexpected condition type "
                f"'{condition_type}' (expected 'text' or 'audio')")
        if condition not in getattr(sample, condition_type):
            raise ValueError(
                f"dropout_condition received an unexpected condition "
                f"'{condition}' of type '{condition_type}'")

    # -- audio nullification (the Pallas hot path) -------------------------------
    def get_null_wav(self, wav, sr=48000) -> AudioCondition:
        out = null_wav_pallas(wav)
        return AudioCondition(wav=out,
                              length=jnp.zeros((1,), jnp.int32),
                              sample_rate=[sr])

    # -- per-condition dropout ----------------------------------------------------
    def dropout_condition_customized(self, sample, condition_type, condition,
                                     customized=None):
        self.check(sample, condition_type, condition)
        if condition_type == "audio":
            audio_cond = sample.audio[condition]
            sample.audio[condition] = self.get_null_wav(
                audio_cond.wav, sr=audio_cond.sample_rate[0])
        elif customized is None:
            sample.text[condition] = None
        else:
            # TODO(synk): host-side string editing ('structure' / '.' cleanup)
            # has no Pallas equivalent; reproduced in plain Python.
            text_cond = deepcopy(sample.text[condition])
            if "structure" in customized:
                for _s in ["[inst]", "[outro]", "[intro]", "[verse]",
                           "[chorus]", "[bridge]"]:
                    text_cond = text_cond.replace(_s, "")
                text_cond = text_cond.replace(" , ", "")
                text_cond = text_cond.replace("  ", " ")
            if "." in customized:
                text_cond = text_cond.replace(" . ", " ")
                text_cond = text_cond.replace(".", " ")
            sample.text[condition] = text_cond
        return sample

    # -- forward -----------------------------------------------------------------
    def forward(self, samples, condition_types=("audio", "text"),
                customized=None):
        new_samples = _copy_samples(samples)
        for condition_type in condition_types:
            # Upstream code sometimes passes 'wav' meaning the audio dict.
            ct = "audio" if condition_type == "wav" else condition_type
            for sample in new_samples:
                for condition in list(sample.attributes[ct]):
                    self.dropout_condition_customized(sample, ct, condition,
                                                      customized)
        return new_samples

    __call__ = forward


# --------------------------------- main ---------------------------------------

if __name__ == "__main__":
    key = jax.random.PRNGKey(0)
    k1, k2, k3, k4 = jax.random.split(key, 4)

    # Deterministic wavs: [B, channels, samples]
    #   wav0 / wav1: small-path (single VMEM block, no grid); wav1 exercises a
    #                non-multiple-of-128 length.
    #   wav2:        tiled path with a masked partial final block (f32).
    #   wav3:        tiled path, bf16, exactly 2 balanced grid steps.
    wav0 = jax.random.normal(k1, (1, 2, 4000), jnp.float32)
    wav1 = jax.random.normal(k2, (1, 1, 3217), jnp.float32)
    wav2 = jax.random.normal(k3, (1, 2, 200_001), jnp.float32)
    wav3 = jax.random.normal(k4, (1, 1, 600_000), jnp.float32).astype(jnp.bfloat16)

    def make_sample(wav, text, sr):
        return ConditioningAttributes(
            text={"description": text},
            audio={"prompt_wav": AudioCondition(
                wav=wav,
                length=jnp.array([wav.shape[-1]], jnp.int32),
                sample_rate=[sr])})

    samples = [
        make_sample(wav0, "energetic pop song [verse] la la [chorus]", 48000),
        make_sample(wav1, "slow sad ballad . with piano .", 24000),
        make_sample(wav2, "long ambient track [intro] drones [outro]", 48000),
        make_sample(wav3, "lofi beat . vinyl crackle", 44100),
    ]

    cfg_dropout = ClassifierFreeGuidanceDropoutInference(seed=1234)
    dropped = cfg_dropout(samples, condition_types=("audio", "text"))
    jax.block_until_ready([s.audio["prompt_wav"].wav for s in dropped])

    # Reference semantics: wav -> wav*0 + 16385 (same dtype), length -> 0,
    # text -> None, originals untouched.
    for orig, new in zip(samples, dropped):
        ow = orig.audio["prompt_wav"].wav
        nw = new.audio["prompt_wav"].wav
        ref = ow * 0 + 16385
        np.testing.assert_allclose(
            np.asarray(nw.astype(jnp.float32)),
            np.asarray(ref.astype(jnp.float32)), rtol=0, atol=0)
        assert nw.shape == ow.shape and nw.dtype == ow.dtype
        assert int(new.audio["prompt_wav"].length[0]) == 0
        assert new.text["description"] is None
        assert orig.text["description"] is not None
        assert new.audio["prompt_wav"].sample_rate == orig.audio[
            "prompt_wav"].sample_rate

    # Empty-wav guard (no kernel launch, shape preserved).
    empty = null_wav_pallas(jnp.zeros((1, 2, 0), jnp.float32))
    assert empty.shape == (1, 2, 0)

    # Exercise the `customized` text path (host-side string edits).
    custom = cfg_dropout(samples, condition_types=("text",),
                         customized=["structure"])
    assert "[verse]" not in custom[0].text["description"]
    assert "[chorus]" not in custom[0].text["description"]

    print("KERNEL_OK")
</pallas_src>

<mosaic_0001>
module attributes {stable_mosaic.version = 11 : i64} {
  func.func @_null_wav_kernel(%arg0: memref<1x2x4000xf32, #tpu.memory_space<vmem>>, %arg1: memref<1x2x4000xf32, #tpu.memory_space<vmem>>) attributes {dimension_semantics = [], scalar_prefetch = 0 : i64, scratch_operands = 0 : i64, tpu.core_type = #tpu.core_type<tc>} {
    %c0 = arith.constant 0 : index
    %c0_0 = arith.constant 0 : index
    %c0_1 = arith.constant 0 : index
    %0 = vector.load %arg0[%c0, %c0_0, %c0_1] : memref<1x2x4000xf32, #tpu.memory_space<vmem>>, vector<1x2x4000xf32>
    %cst = arith.constant 0.000000e+00 : f32
    %1 = vector.broadcast %cst : f32 to vector<1x2x4000xf32>
    %2 = arith.mulf %0, %1 : vector<1x2x4000xf32>
    %cst_2 = arith.constant 1.638500e+04 : f32
    %3 = vector.broadcast %cst_2 : f32 to vector<1x2x4000xf32>
    %4 = arith.addf %2, %3 : vector<1x2x4000xf32>
    %c0_3 = arith.constant 0 : index
    %c0_4 = arith.constant 0 : index
    %c0_5 = arith.constant 0 : index
    %5 = vector.load %arg1[%c0_3, %c0_4, %c0_5] : memref<1x2x4000xf32, #tpu.memory_space<vmem>>, vector<1x2x4000xf32>
    tpu.vector_store %arg1[%c0_3, %c0_4, %c0_5], %4 {strides = array<i32>} : memref<1x2x4000xf32, #tpu.memory_space<vmem>>, vector<1x2x4000xf32>,
    return
  }
}

</mosaic_0001>

<llo_original>
// kernel: _null_wav_impl.1
$region0: #{_null_wav_impl.1}
  #allocation0 [shape = 'u32[]', space=smem, size = 0x4, offset = 0x4, fixed_abs, tag = 'smem constant byte address 0x4 - core index']
  #allocation1 [shape = 'u32[144,128]{1,0:T(1,128)}', space=vmem, size = 0x12000, scoped, tag = 'internal scratch']
  %s0 = inlined_call_operand.hbm [shape: f32[1,2,4000], index: 0, kind: input, shape index: {}]
  %s1 = inlined_call_operand.hbm [shape: f32[1,2,4000], index: 1, kind: output, shape index: {}]
  %s2 = sld [smem:[#allocation0]]
  $region18: #{_null_wav_impl.1} parent=0
    _
  %s4 = ssub.s32 1, %s2
  %s5 = scalar_select 0, %s4, %s2
  $region1: #{_null_wav_impl.1} parent=0
    #allocation2 [shape = 'u8[32768]{0}', space=vmem, size = 0x8000, scoped, tag = 'input window, operand 0, single buffered']
    #allocation3 [shape = 's32[1]{0}', space=sflag, size = 0x4, scoped, tag = 'scoped memory for _null_wav_impl.1']
    #allocation4 [shape = 's32[1]{0}', space=sflag, size = 0x4, scoped, tag = 'scoped memory for _null_wav_impl.1']
    #allocation5 [shape = 'u8[32768]{0}', space=vmem, size = 0x8000, scoped, tag = 'output window, operand 0, single buffered']
    %6 = vsyncpa [#allocation3], 0
    %7 = vsyncpa [#allocation4], 0
    // Predicated region
    $region2: #{_null_wav_impl.1} parent=1 // pred_check
      _
    $region3: #{_null_wav_impl.1} parent=1 // pred_check_branch
      %9 = sbr.rel (0) target = $region5
    $region4: #{_null_wav_impl.1} parent=1 // pred_region
      %s11 = ssub.s32 1024, 1024
      %12 = vsyncadd [#allocation3], %s11
      %s14 = sshll.u32 [#allocation2], 4
      %s15 = int_to_ptr.vmem [resolvable:$true] %s14
      %17 = dma.hbm_to_vmem [thread:$0]  %s0, 1024, %s15, [#allocation3]
    $region5: #{_null_wav_impl.1} parent=1 // pred_fallthru
      _
    // Predicated region
    $region6: #{_null_wav_impl.1} parent=1 // pred_check
      _
    $region7: #{_null_wav_impl.1} parent=1 // pred_check_branch
      %19 = sbr.rel (0) target = $region9
    $region8: #{_null_wav_impl.1} parent=1 // pred_region
      %20 = dma.done [#allocation3], 1024
    $region9: #{_null_wav_impl.1} parent=1 // pred_fallthru
      _
    %v21 = vld [vmem:[#allocation2] sm:$0xff]
    %v22 = vld [vmem:[#allocation2 + $0x8] sm:$0xff]
    %v23 = vld [vmem:[#allocation2 + $0x10] sm:$0xff]
    %v24 = vld [vmem:[#allocation2 + $0x18] sm:$0xff]
    %v25 = vld [vmem:[#allocation2 + $0x20] sm:$0xff]
    %v26 = vld [vmem:[#allocation2 + $0x28] sm:$0xff]
    %v27 = vld [vmem:[#allocation2 + $0x30] sm:$0xff]
    %v28 = vld [vmem:[#allocation2 + $0x38] sm:$0xff]
    %v29 = vmul.f32 %v21, 0.0
    %v30 = vmul.f32 %v22, 0.0
    %v31 = vmul.f32 %v23, 0.0
    %v32 = vmul.f32 %v24, 0.0
    %v33 = vmul.f32 %v25, 0.0
    %v34 = vmul.f32 %v26, 0.0
    %v35 = vmul.f32 %v27, 0.0
    %v36 = vmul.f32 %v28, 0.0
    %v37 = vadd.f32 %v29, 16385.0
    %v38 = vadd.f32 %v30, 16385.0
    %v39 = vadd.f32 %v31, 16385.0
    %v40 = vadd.f32 %v32, 16385.0
    %v41 = vadd.f32 %v33, 16385.0
    %v42 = vadd.f32 %v34, 16385.0
    %v43 = vadd.f32 %v35, 16385.0
    %v44 = vadd.f32 %v36, 16385.0
    %45 = vst [vmem:[#allocation5] sm:$0xff] %v37
    %46 = vst [vmem:[#allocation5 + $0x8] sm:$0xff] %v38
    %47 = vst [vmem:[#allocation5 + $0x10] sm:$0xff] %v39
    %48 = vst [vmem:[#allocation5 + $0x18] sm:$0xff] %v40
    %49 = vst [vmem:[#allocation5 + $0x20] sm:$0xff] %v41
    %50 = vst [vmem:[#allocation5 + $0x28] sm:$0xff] %v42
    %51 = vst [vmem:[#allocation5 + $0x30] sm:$0xff] %v43
    %vm52 = vcmask 1041408
    %vm53 = vcmask 1043458
    %vm54 = vmor %vm53, %vm52
    %vm55 = vcmask 1045508
    %vm56 = vmor %vm55, %vm54
    %vm57 = vcmask 261126
    %vm58 = vmor %vm57, %vm56
    %59 = vst.msk [vmem:[#allocation5 + $0x38] sm:$0xff] %vm58, %v44
    // Predicated region
    $region10: #{_null_wav_impl.1} parent=1 // pred_check
      _
    $region11: #{_null_wav_impl.1} parent=1 // pred_check_branch
      %61 = sbr.rel (0) target = $region13
    $region12: #{_null_wav_impl.1} parent=1 // pred_region
      %s63 = ssub.s32 1024, 1024
      %64 = vsyncadd [#allocation4], %s63
      %s66 = sshll.u32 [#allocation5], 4
      %s67 = int_to_ptr.vmem [resolvable:$true] %s66
      %69 = dma.vmem_to_hbm [thread:$0]  %s67, 1024, %s1, [#allocation4]
    $region13: #{_null_wav_impl.1} parent=1 // pred_fallthru
      _
    // Predicated region
    $region14: #{_null_wav_impl.1} parent=1 // pred_check
      _
    $region15: #{_null_wav_impl.1} parent=1 // pred_check_branch
      %71 = sbr.rel (0) target = $region17
    $region16: #{_null_wav_impl.1} parent=1 // pred_region
      %72 = dma.done [#allocation4], 1024
    $region17: #{_null_wav_impl.1} parent=1 // pred_fallthru
      _
    %73 = vsyncpa [#allocation3], 1
    %74 = vsyncpa [#allocation4], 1

</llo_original>
